<compile_context>
chip_gen: v5e
topology: v5e:2x2
jax: 0.10.0
libtpu: 0.0.40
codegen_flags: <defaults>
</compile_context>

<pallas_src>
import math

import jax
import jax.numpy as jnp
from jax.experimental import pallas as pl
from jax.experimental.pallas import tpu as pltpu


def _round_up(x, m):
    return (x + m - 1) // m * m


# ----------------------------- fused Pallas kernel --------------------------------

def make_fused_kernel(tile_b, R, E, nF, C, max_fsz):
    """Kernel for one batch tile.

    Ref layout (positional):
      x_ref    (tile_b, Lpp, E)  bf16  zero-padded embeddings (Lpp = R + max_fsz - 1)
      w_ref    (max_fsz*E, nF)   bf16  conv weights: taps stacked on K, branches packed on N
      b_ref    (1, nF)           f32   conv biases (branch-packed)
      m_ref    (R, nF)           f32   additive -inf mask for per-branch invalid rows
      fcw_ref  (nF, C)           bf16  fc weight
      fcb_ref  (1, C)            f32   fc bias
      t_ref    (1, tile_b, C)    f32   targets
    Outputs:
      yhat_ref (1, tile_b, C)    f32   sigmoid probabilities
      loss_ref (1, 1, 1)         f32   per-tile BCE-with-logits partial SUM
    """

    def kernel(x_ref, w_ref, b_ref, m_ref, fcw_ref, fcb_ref, t_ref,
               yhat_ref, loss_ref):
        x = x_ref[...]                                        # (tile_b, Lpp, E) bf16
        acc = jnp.zeros((tile_b * R, nF), jnp.float32)
        # max_fsz shifted-window MXU matmuls accumulated in f32 (no im2col buffer).
        for k in range(max_fsz):
            xk = x[:, k:k + R, :].reshape(tile_b * R, E)      # static slice + merge
            wk = w_ref[k * E:(k + 1) * E, :]                  # 8-aligned sublane slice
            acc = acc + jnp.dot(xk, wk, preferred_element_type=jnp.float32)
        y = jnp.tanh(acc + b_ref[...])                        # f32 elementwise (v5e-safe)

        # Branch-aware global max-pool: mask invalid rows to -inf, single reduction.
        y3 = y.reshape(tile_b, R, nF) + m_ref[...][None, :, :]
        pooled = jnp.max(y3, axis=1)                          # (tile_b, nF) == torch.cat(xs, 1)

        logits = jnp.dot(pooled.astype(fcw_ref.dtype), fcw_ref[...],
                         preferred_element_type=jnp.float32) + fcb_ref[...]
        yhat_ref[...] = jax.nn.sigmoid(logits).reshape(1, tile_b, C)

        # Numerically stable BCE-with-logits; emit the per-tile SUM (mean is done in JAX).
        t = t_ref[0]                                          # (tile_b, C)
        elem = (jnp.maximum(logits, 0.0) - logits * t
                + jnp.log1p(jnp.exp(-jnp.abs(logits))))
        s = jnp.sum(jnp.sum(elem, axis=1, keepdims=True), axis=0, keepdims=True)
        loss_ref[...] = s.reshape(1, 1, 1)

    return kernel


# ----------------------------- forward (matches MultiCNN.forward) -----------------

def multicnn_forward(params, tokens, target, filter_sizes, tile_b=None):
    filter_sizes = tuple(filter_sizes)
    n = len(filter_sizes)
    B, L = tokens.shape
    E = params["embed"].shape[1]
    F = params["conv_b"][0].shape[0]
    C = params["fc_b"].shape[0]
    nF = n * F

    if tile_b is None:
        tile_b = 1 if B <= 8 else 8
    assert B % tile_b == 0, "batch must be divisible by tile_b"
    G = B // tile_b

    # --- static conv geometry (padding = round(fsz / 2), Python banker's rounding,
    #     exactly as evaluated in the torch source) ---
    pads = [round(f / 2) for f in filter_sizes]
    max_pad, max_fsz = max(pads), max(filter_sizes)
    los = [max_pad - p for p in pads]                            # first valid row / branch
    louts = [L + 2 * p - f + 1 for f, p in zip(filter_sizes, pads)]
    his = [lo + lt for lo, lt in zip(los, louts)]                # one-past-last valid row
    R = _round_up(max(his), 8)                                   # 8-sublane-aligned pool rows
    Lpp = R + max_fsz - 1                                        # padded seq length in kernel

    # --- embeddings: gather + one zero-pad, bf16 for the MXU (keeps HBM/VMEM bytes halved) ---
    x = jnp.take(params["embed"], tokens, axis=0)                # (B, L, E)
    xp = jnp.pad(x, ((0, 0), (max_pad, Lpp - L - max_pad), (0, 0))).astype(jnp.bfloat16)

    # --- pack all filter branches along N; stack taps along K (zero rows for short taps) ---
    w_pk = jnp.zeros((max_fsz * E, nF), jnp.float32)
    for i, (fsz, w) in enumerate(zip(filter_sizes, params["conv_w"])):
        wt = jnp.transpose(w, (2, 1, 0)).reshape(fsz * E, F)     # (F,E,fsz) -> (fsz*E, F)
        w_pk = w_pk.at[:fsz * E, i * F:(i + 1) * F].set(wt)
    w_pk = w_pk.astype(jnp.bfloat16)
    b_pk = jnp.concatenate(params["conv_b"], axis=0).reshape(1, nF).astype(jnp.float32)

    # --- additive -inf mask for rows outside each branch's valid conv-output range ---
    r = jnp.arange(R, dtype=jnp.int32)[:, None]                  # (R, 1)
    mask_cols = []
    for lo, hi in zip(los, his):
        valid = jnp.broadcast_to((r >= lo) & (r < hi), (R, F))
        mask_cols.append(jnp.where(valid, 0.0, -1e30).astype(jnp.float32))
    mask = jnp.concatenate(mask_cols, axis=1)                    # (R, nF), built in XLA once

    fcw = params["fc_w"].astype(jnp.bfloat16)                    # (nF, C)
    fcb = params["fc_b"].reshape(1, C).astype(jnp.float32)
    t3 = target.astype(jnp.float32).reshape(G, tile_b, C)

    kernel = make_fused_kernel(tile_b, R, E, nF, C, max_fsz)
    grid_spec = pltpu.PrefetchScalarGridSpec(
        num_scalar_prefetch=0,
        grid=(G,),
        in_specs=[
            pl.BlockSpec((tile_b, Lpp, E), lambda b: (b, 0, 0)),   # activations: tiled on B
            pl.BlockSpec((max_fsz * E, nF), lambda b: (0, 0)),     # weights resident in VMEM
            pl.BlockSpec((1, nF), lambda b: (0, 0)),
            pl.BlockSpec((R, nF), lambda b: (0, 0)),
            pl.BlockSpec((nF, C), lambda b: (0, 0)),
            pl.BlockSpec((1, C), lambda b: (0, 0)),
            pl.BlockSpec((1, tile_b, C), lambda b: (b, 0, 0)),
        ],
        out_specs=(
            pl.BlockSpec((1, tile_b, C), lambda b: (b, 0, 0)),
            pl.BlockSpec((1, 1, 1), lambda b: (b, 0, 0)),
        ),
    )
    yhat3, loss_parts = pl.pallas_call(
        kernel,
        out_shape=(jax.ShapeDtypeStruct((G, tile_b, C), jnp.float32),
                   jax.ShapeDtypeStruct((G, 1, 1), jnp.float32)),
        grid_spec=grid_spec,
        compiler_params=pltpu.CompilerParams(
            dimension_semantics=("parallel",),                    # megacore on v7x
            vmem_limit_bytes=32 * 1024 * 1024),
    )(xp, w_pk, b_pk, mask, fcw, fcb, t3)

    yhat = yhat3.reshape(B, C)
    loss = jnp.sum(loss_parts) / float(B * C)                     # closing scalar reduce: free
    return yhat, loss


# ----------------------------- deterministic parameter init -----------------------

def init_params(key, vocab_size, embed_size, filter_sizes, num_filter_maps, num_labels):
    keys = jax.random.split(key, 2 + 2 * len(filter_sizes) + 2)
    embed = jax.random.normal(keys[0], (vocab_size, embed_size), jnp.float32)
    embed = embed.at[0].set(0.0)                                  # padding_idx=0
    conv_w, conv_b = [], []
    for i, fsz in enumerate(filter_sizes):
        fan_in, fan_out = embed_size * fsz, num_filter_maps * fsz
        bound = math.sqrt(6.0 / (fan_in + fan_out))               # xavier_uniform_
        w = jax.random.uniform(keys[1 + 2 * i], (num_filter_maps, embed_size, fsz),
                               jnp.float32, -bound, bound)        # torch Conv1d layout (F,E,fsz)
        conv_w.append(w)
        bb = 1.0 / math.sqrt(fan_in)
        conv_b.append(jax.random.uniform(keys[2 + 2 * i], (num_filter_maps,),
                                         jnp.float32, -bb, bb))
    D = num_filter_maps * len(filter_sizes)
    bound = math.sqrt(6.0 / (D + num_labels))
    fc_w = jax.random.uniform(keys[-2], (num_labels, D), jnp.float32, -bound, bound)
    fc_b = jax.random.uniform(keys[-1], (num_labels,), jnp.float32,
                              -1.0 / math.sqrt(D), 1.0 / math.sqrt(D))
    return {"embed": embed, "conv_w": conv_w, "conv_b": conv_b,
            "fc_w": jnp.transpose(fc_w), "fc_b": fc_b}            # fc_w stored as (D, C)


# ----------------------------- pure-JAX reference ---------------------------------

def ref_forward(params, tokens, target, filter_sizes):
    x = jnp.take(params["embed"], tokens, axis=0)
    feats = []
    for fsz, w, b in zip(filter_sizes, params["conv_w"], params["conv_b"]):
        pad = round(fsz / 2)
        xp = jnp.pad(x, ((0, 0), (pad, pad), (0, 0)))
        lout = xp.shape[1] - fsz + 1
        acc = sum(jnp.einsum("ble,fe->blf", xp[:, k:k + lout, :], w[:, :, k])
                  for k in range(fsz)) + b
        feats.append(jnp.max(jnp.tanh(acc), axis=1))
    feat = jnp.concatenate(feats, axis=1)
    logits = feat @ params["fc_w"] + params["fc_b"]
    yhat = jax.nn.sigmoid(logits)
    loss = jnp.mean(jnp.maximum(logits, 0.0) - logits * target
                    + jnp.log1p(jnp.exp(-jnp.abs(logits))))
    return yhat, loss


# ----------------------------- main ------------------------------------------------

if __name__ == "__main__":
    VOCAB, EMBED, SEQ, BATCH = 50, 32, 8, 2
    FILTER_SIZES = (3, 5)
    NUM_FILTER_MAPS = 32
    NUM_LABELS = 4                  # stands in for len(LABEL_TYPES); task='multilabel'

    key = jax.random.PRNGKey(0)
    kp, kt, ky = jax.random.split(key, 3)
    params = init_params(kp, VOCAB, EMBED, FILTER_SIZES, NUM_FILTER_MAPS, NUM_LABELS)
    tokens = jax.random.randint(kt, (BATCH, SEQ), 0, VOCAB, dtype=jnp.int32)
    target = jax.random.bernoulli(ky, 0.5, (BATCH, NUM_LABELS)).astype(jnp.float32)

    # tile_b=1 -> grid of 2 parallel batch steps even at this toy batch size.
    yhat, loss = multicnn_forward(params, tokens, target, FILTER_SIZES, tile_b=1)
    jax.block_until_ready((yhat, loss))

    ry, rl = ref_forward(params, tokens, target, FILTER_SIZES)
    # Tolerance covers bf16 MXU inputs in the kernel vs. default-precision f32 ref matmuls
    # (tanh/sigmoid compress errors; logits-level discrepancy is O(1e-2) worst case).
    assert jnp.allclose(yhat, ry, atol=2e-2, rtol=2e-2), float(jnp.max(jnp.abs(yhat - ry)))
    assert jnp.allclose(loss, rl, atol=2e-2, rtol=2e-2), float(jnp.abs(loss - rl))
    print("KERNEL_OK")
</pallas_src>

<mosaic_0001>
module attributes {stable_mosaic.version = 11 : i64} {
  func.func @kernel(%arg0: i32, %arg1: memref<1x20x32xbf16, #tpu.memory_space<vmem>>, %arg2: memref<160x64xbf16, #tpu.memory_space<vmem>>, %arg3: memref<1x64xf32, #tpu.memory_space<vmem>>, %arg4: memref<16x64xf32, #tpu.memory_space<vmem>>, %arg5: memref<64x4xbf16, #tpu.memory_space<vmem>>, %arg6: memref<1x4xf32, #tpu.memory_space<vmem>>, %arg7: memref<1x1x4xf32, #tpu.memory_space<vmem>>, %arg8: memref<1x1x4xf32, #tpu.memory_space<vmem>>, %arg9: memref<1x1x1xf32, #tpu.memory_space<vmem>>) attributes {dimension_semantics = [#tpu.dimension_semantics<parallel>], iteration_bounds = array<i64: 2>, scalar_prefetch = 0 : i64, scratch_operands = 0 : i64, tpu.core_type = #tpu.core_type<tc>, window_params = [{transform_indices = @transform_0, window_bounds = array<i64: 1, 20, 32>}, {pipeline_mode = #tpu.pipeline_mode<synchronous>, transform_indices = @transform_1, window_bounds = array<i64: 160, 64>}, {pipeline_mode = #tpu.pipeline_mode<synchronous>, transform_indices = @transform_2, window_bounds = array<i64: 1, 64>}, {pipeline_mode = #tpu.pipeline_mode<synchronous>, transform_indices = @transform_3, window_bounds = array<i64: 16, 64>}, {pipeline_mode = #tpu.pipeline_mode<synchronous>, transform_indices = @transform_4, window_bounds = array<i64: 64, 4>}, {pipeline_mode = #tpu.pipeline_mode<synchronous>, transform_indices = @transform_5, window_bounds = array<i64: 1, 4>}, {transform_indices = @transform_6, window_bounds = array<i64: 1, 1, 4>}, {transform_indices = @transform_7, window_bounds = array<i64: 1, 1, 4>}, {transform_indices = @transform_8, window_bounds = array<i64: 1, 1, 1>}]} {
    %c0 = arith.constant 0 : index
    %c0_0 = arith.constant 0 : index
    %c0_1 = arith.constant 0 : index
    %0 = vector.load %arg1[%c0, %c0_0, %c0_1] : memref<1x20x32xbf16, #tpu.memory_space<vmem>>, vector<1x20x32xbf16>
    %cst = arith.constant 0.000000e+00 : f32
    %1 = vector.broadcast %cst : f32 to vector<16x64xf32>
    %2 = vector.extract_strided_slice %0 {offsets = [0, 0, 0], sizes = [1, 16, 32], strides = [1, 1, 1]} : vector<1x20x32xbf16> to vector<1x16x32xbf16>
    %3 = vector.shape_cast %2 : vector<1x16x32xbf16> to vector<16x32xbf16>
    %c0_2 = arith.constant 0 : index
    %c0_3 = arith.constant 0 : index
    %4 = vector.load %arg2[%c0_2, %c0_3] : memref<160x64xbf16, #tpu.memory_space<vmem>>, vector<32x64xbf16>
    %cst_4 = arith.constant dense<0.000000e+00> : vector<16x64xf32>
    %5 = tpu.matmul %3, %4, %cst_4 {dimension_numbers = #tpu.dot_dimension_numbers<[1], [0], [0], [1], [0, 0, 1, 1], [], []>} : vector<16x32xbf16>, vector<32x64xbf16>, vector<16x64xf32> -> vector<16x64xf32>
    %6 = arith.addf %1, %5 : vector<16x64xf32>
    %7 = vector.extract_strided_slice %0 {offsets = [0, 1, 0], sizes = [1, 16, 32], strides = [1, 1, 1]} : vector<1x20x32xbf16> to vector<1x16x32xbf16>
    %8 = vector.shape_cast %7 : vector<1x16x32xbf16> to vector<16x32xbf16>
    %c32 = arith.constant 32 : index
    %c0_5 = arith.constant 0 : index
    %9 = vector.load %arg2[%c32, %c0_5] : memref<160x64xbf16, #tpu.memory_space<vmem>>, vector<32x64xbf16>
    %cst_6 = arith.constant dense<0.000000e+00> : vector<16x64xf32>
    %10 = tpu.matmul %8, %9, %cst_6 {dimension_numbers = #tpu.dot_dimension_numbers<[1], [0], [0], [1], [0, 0, 1, 1], [], []>} : vector<16x32xbf16>, vector<32x64xbf16>, vector<16x64xf32> -> vector<16x64xf32>
    %11 = arith.addf %6, %10 : vector<16x64xf32>
    %12 = vector.extract_strided_slice %0 {offsets = [0, 2, 0], sizes = [1, 16, 32], strides = [1, 1, 1]} : vector<1x20x32xbf16> to vector<1x16x32xbf16>
    %13 = vector.shape_cast %12 : vector<1x16x32xbf16> to vector<16x32xbf16>
    %c64 = arith.constant 64 : index
    %c0_7 = arith.constant 0 : index
    %14 = vector.load %arg2[%c64, %c0_7] : memref<160x64xbf16, #tpu.memory_space<vmem>>, vector<32x64xbf16>
    %cst_8 = arith.constant dense<0.000000e+00> : vector<16x64xf32>
    %15 = tpu.matmul %13, %14, %cst_8 {dimension_numbers = #tpu.dot_dimension_numbers<[1], [0], [0], [1], [0, 0, 1, 1], [], []>} : vector<16x32xbf16>, vector<32x64xbf16>, vector<16x64xf32> -> vector<16x64xf32>
    %16 = arith.addf %11, %15 : vector<16x64xf32>
    %17 = vector.extract_strided_slice %0 {offsets = [0, 3, 0], sizes = [1, 16, 32], strides = [1, 1, 1]} : vector<1x20x32xbf16> to vector<1x16x32xbf16>
    %18 = vector.shape_cast %17 : vector<1x16x32xbf16> to vector<16x32xbf16>
    %c96 = arith.constant 96 : index
    %c0_9 = arith.constant 0 : index
    %19 = vector.load %arg2[%c96, %c0_9] : memref<160x64xbf16, #tpu.memory_space<vmem>>, vector<32x64xbf16>
    %cst_10 = arith.constant dense<0.000000e+00> : vector<16x64xf32>
    %20 = tpu.matmul %18, %19, %cst_10 {dimension_numbers = #tpu.dot_dimension_numbers<[1], [0], [0], [1], [0, 0, 1, 1], [], []>} : vector<16x32xbf16>, vector<32x64xbf16>, vector<16x64xf32> -> vector<16x64xf32>
    %21 = arith.addf %16, %20 : vector<16x64xf32>
    %22 = vector.extract_strided_slice %0 {offsets = [0, 4, 0], sizes = [1, 16, 32], strides = [1, 1, 1]} : vector<1x20x32xbf16> to vector<1x16x32xbf16>
    %23 = vector.shape_cast %22 : vector<1x16x32xbf16> to vector<16x32xbf16>
    %c128 = arith.constant 128 : index
    %c0_11 = arith.constant 0 : index
    %24 = vector.load %arg2[%c128, %c0_11] : memref<160x64xbf16, #tpu.memory_space<vmem>>, vector<32x64xbf16>
    %cst_12 = arith.constant dense<0.000000e+00> : vector<16x64xf32>
    %25 = tpu.matmul %23, %24, %cst_12 {dimension_numbers = #tpu.dot_dimension_numbers<[1], [0], [0], [1], [0, 0, 1, 1], [], []>} : vector<16x32xbf16>, vector<32x64xbf16>, vector<16x64xf32> -> vector<16x64xf32>
    %26 = arith.addf %21, %25 : vector<16x64xf32>
    %c0_13 = arith.constant 0 : index
    %c0_14 = arith.constant 0 : index
    %27 = vector.load %arg3[%c0_13, %c0_14] : memref<1x64xf32, #tpu.memory_space<vmem>>, vector<1x64xf32>
    %28 = vector.broadcast %27 : vector<1x64xf32> to vector<16x64xf32>
    %29 = arith.addf %26, %28 : vector<16x64xf32>
    %30 = math.tanh %29 : vector<16x64xf32>
    %31 = vector.shape_cast %30 : vector<16x64xf32> to vector<1x16x64xf32>
    %c0_15 = arith.constant 0 : index
    %c0_16 = arith.constant 0 : index
    %32 = vector.load %arg4[%c0_15, %c0_16] : memref<16x64xf32, #tpu.memory_space<vmem>>, vector<16x64xf32>
    %33 = vector.shape_cast %32 : vector<16x64xf32> to vector<1x16x64xf32>
    %34 = arith.addf %31, %33 : vector<1x16x64xf32>
    %cst_17 = arith.constant dense<0xFF800000> : vector<1x64xf32>
    %35 = vector.multi_reduction <maximumf>, %34, %cst_17 [1] : vector<1x16x64xf32> to vector<1x64xf32>
    %36 = arith.truncf %35 : vector<1x64xf32> to vector<1x64xbf16>
    %c0_18 = arith.constant 0 : index
    %c0_19 = arith.constant 0 : index
    %37 = vector.load %arg5[%c0_18, %c0_19] : memref<64x4xbf16, #tpu.memory_space<vmem>>, vector<64x4xbf16>
    %cst_20 = arith.constant dense<0.000000e+00> : vector<1x4xf32>
    %38 = tpu.matmul %36, %37, %cst_20 {dimension_numbers = #tpu.dot_dimension_numbers<[1], [0], [0], [1], [0, 0, 1, 1], [], []>} : vector<1x64xbf16>, vector<64x4xbf16>, vector<1x4xf32> -> vector<1x4xf32>
    %c0_21 = arith.constant 0 : index
    %c0_22 = arith.constant 0 : index
    %39 = vector.load %arg6[%c0_21, %c0_22] : memref<1x4xf32, #tpu.memory_space<vmem>>, vector<1x4xf32>
    %40 = arith.addf %38, %39 : vector<1x4xf32>
    %41 = arith.negf %40 : vector<1x4xf32>
    %42 = math.exp %41 : vector<1x4xf32>
    %cst_23 = arith.constant 1.000000e+00 : f32
    %43 = vector.broadcast %cst_23 : f32 to vector<1x4xf32>
    %44 = arith.addf %43, %42 : vector<1x4xf32>
    %45 = arith.divf %43, %44 : vector<1x4xf32>
    %46 = vector.shape_cast %45 : vector<1x4xf32> to vector<1x1x4xf32>
    %c0_24 = arith.constant 0 : index
    %c0_25 = arith.constant 0 : index
    %c0_26 = arith.constant 0 : index
    %47 = vector.load %arg8[%c0_24, %c0_25, %c0_26] : memref<1x1x4xf32, #tpu.memory_space<vmem>>, vector<1x1x4xf32>
    tpu.vector_store %arg8[%c0_24, %c0_25, %c0_26], %46 {strides = array<i32>} : memref<1x1x4xf32, #tpu.memory_space<vmem>>, vector<1x1x4xf32>,
    %c0_27 = arith.constant 0 : index
    %c0_28 = arith.constant 0 : index
    %c0_29 = arith.constant 0 : index
    %48 = vector.load %arg7[%c0_27, %c0_28, %c0_29] : memref<1x1x4xf32, #tpu.memory_space<vmem>>, vector<1x1x4xf32>
    %49 = vector.shape_cast %48 : vector<1x1x4xf32> to vector<1x4xf32>
    %cst_30 = arith.constant 0.000000e+00 : f32
    %50 = vector.broadcast %cst_30 : f32 to vector<1x4xf32>
    %51 = arith.maximumf %40, %50 : vector<1x4xf32>
    %52 = arith.mulf %40, %49 : vector<1x4xf32>
    %53 = arith.subf %51, %52 : vector<1x4xf32>
    %54 = math.absf %40 : vector<1x4xf32>
    %cst_31 = arith.constant 0.000000e+00 : f32
    %55 = vector.broadcast %cst_31 : f32 to vector<1x4xf32>
    %56 = arith.subf %55, %54 : vector<1x4xf32>
    %57 = math.exp %56 : vector<1x4xf32>
    %58 = math.log1p %57 : vector<1x4xf32>
    %59 = arith.addf %53, %58 : vector<1x4xf32>
    %cst_32 = arith.constant dense<0.000000e+00> : vector<1xf32>
    %60 = vector.multi_reduction <add>, %59, %cst_32 [1] : vector<1x4xf32> to vector<1xf32>
    %61 = vector.shape_cast %60 : vector<1xf32> to vector<1x1xf32>
    %cst_33 = arith.constant dense<0.000000e+00> : vector<1xf32>
    %62 = vector.multi_reduction <add>, %61, %cst_33 [0] : vector<1x1xf32> to vector<1xf32>
    %63 = vector.shape_cast %62 : vector<1xf32> to vector<1x1xf32>
    %64 = vector.shape_cast %63 : vector<1x1xf32> to vector<1x1x1xf32>
    %c0_34 = arith.constant 0 : index
    %c0_35 = arith.constant 0 : index
    %c0_36 = arith.constant 0 : index
    %65 = vector.load %arg9[%c0_34, %c0_35, %c0_36] : memref<1x1x1xf32, #tpu.memory_space<vmem>>, vector<1x1x1xf32>
    tpu.vector_store %arg9[%c0_34, %c0_35, %c0_36], %64 {strides = array<i32>} : memref<1x1x1xf32, #tpu.memory_space<vmem>>, vector<1x1x1xf32>,
    return
  }
  func.func @transform_0(%arg0: i32) -> (i32, i32, i32) {
    %c0_i32 = arith.constant 0 : i32
    %c0_i32_0 = arith.constant 0 : i32
    %c0_i32_1 = arith.constant 0 : i32
    return %arg0, %c0_i32, %c0_i32_0 : i32, i32, i32
  }
  func.func @transform_1(%arg0: i32) -> (i32, i32) {
    %c0_i32 = arith.constant 0 : i32
    %c0_i32_0 = arith.constant 0 : i32
    %c0_i32_1 = arith.constant 0 : i32
    return %c0_i32, %c0_i32_0 : i32, i32
  }
  func.func @transform_2(%arg0: i32) -> (i32, i32) {
    %c0_i32 = arith.constant 0 : i32
    %c0_i32_0 = arith.constant 0 : i32
    %c0_i32_1 = arith.constant 0 : i32
    return %c0_i32, %c0_i32_0 : i32, i32
  }
  func.func @transform_3(%arg0: i32) -> (i32, i32) {
    %c0_i32 = arith.constant 0 : i32
    %c0_i32_0 = arith.constant 0 : i32
    %c0_i32_1 = arith.constant 0 : i32
    return %c0_i32, %c0_i32_0 : i32, i32
  }
  func.func @transform_4(%arg0: i32) -> (i32, i32) {
    %c0_i32 = arith.constant 0 : i32
    %c0_i32_0 = arith.constant 0 : i32
    %c0_i32_1 = arith.constant 0 : i32
    return %c0_i32, %c0_i32_0 : i32, i32
  }
  func.func @transform_5(%arg0: i32) -> (i32, i32) {
    %c0_i32 = arith.constant 0 : i32
    %c0_i32_0 = arith.constant 0 : i32
    %c0_i32_1 = arith.constant 0 : i32
    return %c0_i32, %c0_i32_0 : i32, i32
  }
  func.func @transform_6(%arg0: i32) -> (i32, i32, i32) {
    %c0_i32 = arith.constant 0 : i32
    %c0_i32_0 = arith.constant 0 : i32
    %c0_i32_1 = arith.constant 0 : i32
    return %arg0, %c0_i32, %c0_i32_0 : i32, i32, i32
  }
  func.func @transform_7(%arg0: i32) -> (i32, i32, i32) {
    %c0_i32 = arith.constant 0 : i32
    %c0_i32_0 = arith.constant 0 : i32
    %c0_i32_1 = arith.constant 0 : i32
    return %arg0, %c0_i32, %c0_i32_0 : i32, i32, i32
  }
  func.func @transform_8(%arg0: i32) -> (i32, i32, i32) {
    %c0_i32 = arith.constant 0 : i32
    %c0_i32_0 = arith.constant 0 : i32
    %c0_i32_1 = arith.constant 0 : i32
    return %arg0, %c0_i32, %c0_i32_0 : i32, i32, i32
  }
}

</mosaic_0001>

<llo_original>
// kernel: tpu_custom_call.1
$region0: #{tpu_custom_call.1}
  #allocation0 [shape = 'u32[]', space=smem, size = 0x4, offset = 0x4, fixed_abs, tag = 'smem constant byte address 0x4 - core index']
  #allocation1 [shape = 'u32[72,128]{1,0:T(1,128)}', space=vmem, size = 0x9000, scoped, tag = 'internal scratch']
  %s0 = inlined_call_operand.vmem [shape: bf16[2,20,32], index: 0, kind: input, shape index: {}]
  %s1 = inlined_call_operand.vmem [shape: bf16[160,64], index: 1, kind: input, shape index: {}]
  %s2 = inlined_call_operand.vmem [shape: f32[1,64], index: 2, kind: input, shape index: {}]
  %s3 = inlined_call_operand.vmem [shape: f32[16,64], index: 3, kind: input, shape index: {}]
  %s4 = inlined_call_operand.vmem [shape: bf16[64,4], index: 4, kind: input, shape index: {}]
  %s5 = inlined_call_operand.vmem [shape: f32[1,4], index: 5, kind: input, shape index: {}]
  %s6 = inlined_call_operand.vmem [shape: f32[2,1,4], index: 6, kind: input, shape index: {}]
  %s7 = inlined_call_operand.hbm [shape: f32[2,1,4], index: 7, kind: output, shape index: {0}]
  %s8 = inlined_call_operand.vmem [shape: f32[2,1,1], index: 8, kind: output, shape index: {1}]
  %9 = xla_tuple %s7, %s8
  %s10 = sld [smem:[#allocation0]]
  $region69: #{tpu_custom_call.1} parent=0
    _
  %s12 = ssub.s32 1, %s10
  %s13 = scalar_select 0, %s12, %s10
  $region1: #{tpu_custom_call.1} parent=0
    #allocation2 [shape = 'u8[1024]{0}', space=vmem, size = 0x400, scoped, tag = 'output window, operand 0']
    #allocation3 [shape = 's32[2]{0}', space=sflag, size = 0x8, scoped, tag = 'scoped memory for tpu_custom_call.1']
    %14 = vsyncpa [#allocation3], 0
    %s15 = scalar_lea.sflag [#allocation3], 1
    %16 = vsyncpa %s15, 0
    loop: start=0, step=1, limit=4
    $region2: #{tpu_custom_call.1} parent=1 // loop_pre_header
      _
    $region3: #{tpu_custom_call.1} parent=1 // loop_header
      %s18 = sphi 0, %s22
      %p19 = scmp.ge.s32.totalorder %s18, 4
      %s28 = sphi 0, %s30
      %s31 = sphi 0, %s28
      %s32 = sphi 0, %s31
      %s48 = sphi 0, %s32
      %s52 = sphi 0, %s52
      %s54 = sphi 0, %s52
      %s55 = sphi 0, %s54
      %s69 = sphi 0, %s55
      %s73 = sphi 0, %s73
      %s75 = sphi 0, %s73
      %s76 = sphi 0, %s75
      %s90 = sphi 0, %s76
      %s94 = sphi 0, %s94
      %s96 = sphi 0, %s94
      %s97 = sphi 0, %s96
      %s111 = sphi 0, %s97
      %s115 = sphi 0, %s115
      %s117 = sphi 0, %s115
      %s118 = sphi 0, %s117
      %s132 = sphi 0, %s118
      %s136 = sphi 0, %s136
      %s138 = sphi 0, %s136
      %s139 = sphi 0, %s138
      %s153 = sphi 0, %s139
      %s159 = sphi 0, %s161
      %s162 = sphi 0, %s159
      %s163 = sphi 0, %s162
      %s179 = sphi 0, %s163
      %s185 = sphi 0, %s187
      %s188 = sphi 0, %s185
      %s189 = sphi 0, %s188
      %s205 = sphi 0, %s189
      %s211 = sphi 0, %s213
      %s214 = sphi 0, %s211
      %s215 = sphi 0, %s214
      %s231 = sphi 0, %s215
    $region4: #{tpu_custom_call.1} parent=1 // loop_header_branch
      %21 = sbr.rel (%p19) target = $region8
    $region5: #{tpu_custom_call.1} parent=1 // loop_body
      %s23 = ssub.s32 %s18, 1
      %s24 = ssub.s32 %s18, 2
      %s25 = sadd.s32 %s18, 1
      %s26 = ssub.s32 %s18, %s25
      %p27 = scmp.eq.s32.totalorder %s26, 0
      %s29 = sadd.s32 %s28, 1
      %s30 = scalar_select %p27, %s28, %s29
      %p33 = pneg %p27
      %p34 = scmp.eq.s32.totalorder %s18, 1
      %p35 = por %p33, %p34
      %p36 = scmp.ne.s32.totalorder %s28, %s31
      %p37 = scmp.eq.s32.totalorder %s18, 0
      %p38 = por %p36, %p37
      %p39 = scmp.ne.s32.totalorder %s28, %s31
      %p40 = scmp.eq.s32.totalorder %s23, 1
      %p41 = por %p39, %p40
      %p42 = scmp.ne.s32.totalorder %s31, %s32
      %p43 = scmp.eq.s32.totalorder %s23, 0
      %p44 = por %p42, %p43
      %p45 = scmp.ne.s32.totalorder %s31, %s32
      %p46 = scmp.eq.s32.totalorder %s24, 1
      %p47 = por %p45, %p46
      %p49 = scmp.ne.s32.totalorder %s32, %s48
      %p50 = scmp.eq.s32.totalorder %s24, 0
      %p51 = por %p49, %p50
      %s53 = sadd.s32 %s52, 1
      %p56 = scmp.eq.s32.totalorder %s18, 1
      %p57 = scmp.ne.s32.totalorder %s52, %s54
      %p58 = scmp.eq.s32.totalorder %s18, 0
      %p59 = por %p57, %p58
      %p60 = scmp.ne.s32.totalorder %s52, %s54
      %p61 = scmp.eq.s32.totalorder %s23, 1
      %p62 = por %p60, %p61
      %p63 = scmp.ne.s32.totalorder %s54, %s55
      %p64 = scmp.eq.s32.totalorder %s23, 0
      %p65 = por %p63, %p64
      %p66 = scmp.ne.s32.totalorder %s54, %s55
      %p67 = scmp.eq.s32.totalorder %s24, 1
      %p68 = por %p66, %p67
      %p70 = scmp.ne.s32.totalorder %s55, %s69
      %p71 = scmp.eq.s32.totalorder %s24, 0
      %p72 = por %p70, %p71
      %s74 = sadd.s32 %s73, 1
      %p77 = scmp.eq.s32.totalorder %s18, 1
      %p78 = scmp.ne.s32.totalorder %s73, %s75
      %p79 = scmp.eq.s32.totalorder %s18, 0
      %p80 = por %p78, %p79
      %p81 = scmp.ne.s32.totalorder %s73, %s75
      %p82 = scmp.eq.s32.totalorder %s23, 1
      %p83 = por %p81, %p82
      %p84 = scmp.ne.s32.totalorder %s75, %s76
      %p85 = scmp.eq.s32.totalorder %s23, 0
      %p86 = por %p84, %p85
      %p87 = scmp.ne.s32.totalorder %s75, %s76
      %p88 = scmp.eq.s32.totalorder %s24, 1
      %p89 = por %p87, %p88
      %p91 = scmp.ne.s32.totalorder %s76, %s90
      %p92 = scmp.eq.s32.totalorder %s24, 0
      %p93 = por %p91, %p92
      %s95 = sadd.s32 %s94, 1
      %p98 = scmp.eq.s32.totalorder %s18, 1
      %p99 = scmp.ne.s32.totalorder %s94, %s96
      %p100 = scmp.eq.s32.totalorder %s18, 0
      %p101 = por %p99, %p100
      %p102 = scmp.ne.s32.totalorder %s94, %s96
      %p103 = scmp.eq.s32.totalorder %s23, 1
      %p104 = por %p102, %p103
      %p105 = scmp.ne.s32.totalorder %s96, %s97
      %p106 = scmp.eq.s32.totalorder %s23, 0
      %p107 = por %p105, %p106
      %p108 = scmp.ne.s32.totalorder %s96, %s97
      %p109 = scmp.eq.s32.totalorder %s24, 1
      %p110 = por %p108, %p109
      %p112 = scmp.ne.s32.totalorder %s97, %s111
      %p113 = scmp.eq.s32.totalorder %s24, 0
      %p114 = por %p112, %p113
      %s116 = sadd.s32 %s115, 1
      %p119 = scmp.eq.s32.totalorder %s18, 1
      %p120 = scmp.ne.s32.totalorder %s115, %s117
      %p121 = scmp.eq.s32.totalorder %s18, 0
      %p122 = por %p120, %p121
      %p123 = scmp.ne.s32.totalorder %s115, %s117
      %p124 = scmp.eq.s32.totalorder %s23, 1
      %p125 = por %p123, %p124
      %p126 = scmp.ne.s32.totalorder %s117, %s118
      %p127 = scmp.eq.s32.totalorder %s23, 0
      %p128 = por %p126, %p127
      %p129 = scmp.ne.s32.totalorder %s117, %s118
      %p130 = scmp.eq.s32.totalorder %s24, 1
      %p131 = por %p129, %p130
      %p133 = scmp.ne.s32.totalorder %s118, %s132
      %p134 = scmp.eq.s32.totalorder %s24, 0
      %p135 = por %p133, %p134
      %s137 = sadd.s32 %s136, 1
      %p140 = scmp.eq.s32.totalorder %s18, 1
      %p141 = scmp.ne.s32.totalorder %s136, %s138
      %p142 = scmp.eq.s32.totalorder %s18, 0
      %p143 = por %p141, %p142
      %p144 = scmp.ne.s32.totalorder %s136, %s138
      %p145 = scmp.eq.s32.totalorder %s23, 1
      %p146 = por %p144, %p145
      %p147 = scmp.ne.s32.totalorder %s138, %s139
      %p148 = scmp.eq.s32.totalorder %s23, 0
      %p149 = por %p147, %p148
      %p150 = scmp.ne.s32.totalorder %s138, %s139
      %p151 = scmp.eq.s32.totalorder %s24, 1
      %p152 = por %p150, %p151
      %p154 = scmp.ne.s32.totalorder %s139, %s153
      %p155 = scmp.eq.s32.totalorder %s24, 0
      %p156 = por %p154, %p155
      %s157 = ssub.s32 %s18, %s25
      %p158 = scmp.eq.s32.totalorder %s157, 0
      %s160 = sadd.s32 %s159, 1
      %s161 = scalar_select %p158, %s159, %s160
      %p164 = pneg %p158
      %p165 = scmp.eq.s32.totalorder %s18, 1
      %p166 = por %p164, %p165
      %p167 = scmp.ne.s32.totalorder %s159, %s162
      %p168 = scmp.eq.s32.totalorder %s18, 0
      %p169 = por %p167, %p168
      %p170 = scmp.ne.s32.totalorder %s159, %s162
      %p171 = scmp.eq.s32.totalorder %s23, 1
      %p172 = por %p170, %p171
      %p173 = scmp.ne.s32.totalorder %s162, %s163
      %p174 = scmp.eq.s32.totalorder %s23, 0
      %p175 = por %p173, %p174
      %p176 = scmp.ne.s32.totalorder %s162, %s163
      %p177 = scmp.eq.s32.totalorder %s24, 1
      %p178 = por %p176, %p177
      %p180 = scmp.ne.s32.totalorder %s163, %s179
      %p181 = scmp.eq.s32.totalorder %s24, 0
      %p182 = por %p180, %p181
      %s183 = ssub.s32 %s18, %s25
      %p184 = scmp.eq.s32.totalorder %s183, 0
      %s186 = sadd.s32 %s185, 1
      %s187 = scalar_select %p184, %s185, %s186
      %p190 = pneg %p184
      %p191 = scmp.eq.s32.totalorder %s18, 1
      %p192 = por %p190, %p191
      %p193 = scmp.ne.s32.totalorder %s185, %s188
      %p194 = scmp.eq.s32.totalorder %s18, 0
      %p195 = por %p193, %p194
      %p196 = scmp.ne.s32.totalorder %s185, %s188
      %p197 = scmp.eq.s32.totalorder %s23, 1
      %p198 = por %p196, %p197
      %p199 = scmp.ne.s32.totalorder %s188, %s189
      %p200 = scmp.eq.s32.totalorder %s23, 0
      %p201 = por %p199, %p200
      %p202 = scmp.ne.s32.totalorder %s188, %s189
      %p203 = scmp.eq.s32.totalorder %s24, 1
      %p204 = por %p202, %p203
      %p206 = scmp.ne.s32.totalorder %s189, %s205
      %p207 = scmp.eq.s32.totalorder %s24, 0
      %p208 = por %p206, %p207
      %s209 = ssub.s32 %s18, %s25
      %p210 = scmp.eq.s32.totalorder %s209, 0
      %s212 = sadd.s32 %s211, 1
      %s213 = scalar_select %p210, %s211, %s212
      %p216 = pneg %p210
      %p217 = scmp.eq.s32.totalorder %s18, 1
      %p218 = por %p216, %p217
      %p219 = scmp.ne.s32.totalorder %s211, %s214
      %p220 = scmp.eq.s32.totalorder %s18, 0
      %p221 = por %p219, %p220
      %p222 = scmp.ne.s32.totalorder %s211, %s214
      %p223 = scmp.eq.s32.totalorder %s23, 1
      %p224 = por %p222, %p223
      %p225 = scmp.ne.s32.totalorder %s214, %s215
      %p226 = scmp.eq.s32.totalorder %s23, 0
      %p227 = por %p225, %p226
      %p228 = scmp.ne.s32.totalorder %s214, %s215
      %p229 = scmp.eq.s32.totalorder %s24, 1
      %p230 = por %p228, %p229
      %p232 = scmp.ne.s32.totalorder %s215, %s231
      %p233 = scmp.eq.s32.totalorder %s24, 0
      %p234 = por %p232, %p233
      %p235 = scmp.le.s32.totalorder 1, %s18
      %p236 = scmp.lt.s32.totalorder %s18, 3
      %p237 = pnand %p235, %p236
      %p238 = pneg %p237
      // Predicated region
      $region9: #{tpu_custom_call.1} parent=5 // pred_check
        _
      $region10: #{tpu_custom_call.1} parent=5 // pred_check_branch
        %240 = sbr.rel (%p237) target = $region12
      $region11: #{tpu_custom_call.1} parent=5 // pred_region
        %s241 = ssub.s32 %s18, 1
        // Predicated region
        $region13: #{tpu_custom_call.1} parent=11 // pred_check
          %p242 = pneg %p65
        $region14: #{tpu_custom_call.1} parent=11 // pred_check_branch
          %244 = sbr.rel (%p242) target = $region16
        $region15: #{tpu_custom_call.1} parent=11 // pred_region
          _
        $region16: #{tpu_custom_call.1} parent=11 // pred_fallthru
          _
        // Predicated region
        $region17: #{tpu_custom_call.1} parent=11 // pred_check
          %p245 = pneg %p86
        $region18: #{tpu_custom_call.1} parent=11 // pred_check_branch
          %247 = sbr.rel (%p245) target = $region20
        $region19: #{tpu_custom_call.1} parent=11 // pred_region
          _
        $region20: #{tpu_custom_call.1} parent=11 // pred_fallthru
          _
        // Predicated region
        $region21: #{tpu_custom_call.1} parent=11 // pred_check
          %p248 = pneg %p107
        $region22: #{tpu_custom_call.1} parent=11 // pred_check_branch
          %250 = sbr.rel (%p248) target = $region24
        $region23: #{tpu_custom_call.1} parent=11 // pred_region
          _
        $region24: #{tpu_custom_call.1} parent=11 // pred_fallthru
          _
        // Predicated region
        $region25: #{tpu_custom_call.1} parent=11 // pred_check
          %p251 = pneg %p128
        $region26: #{tpu_custom_call.1} parent=11 // pred_check_branch
          %253 = sbr.rel (%p251) target = $region28
        $region27: #{tpu_custom_call.1} parent=11 // pred_region
          _
        $region28: #{tpu_custom_call.1} parent=11 // pred_fallthru
          _
        // Predicated region
        $region29: #{tpu_custom_call.1} parent=11 // pred_check
          %p254 = pneg %p149
        $region30: #{tpu_custom_call.1} parent=11 // pred_check_branch
          %256 = sbr.rel (%p254) target = $region32
        $region31: #{tpu_custom_call.1} parent=11 // pred_region
          _
        $region32: #{tpu_custom_call.1} parent=11 // pred_fallthru
          _
      $region12: #{tpu_custom_call.1} parent=5 // pred_fallthru
        _
      %p257 = scmp.lt.s32.totalorder %s18, 2
      // Predicated region
      $region33: #{tpu_custom_call.1} parent=5 // pred_check
        %p258 = pneg %p257
      $region34: #{tpu_custom_call.1} parent=5 // pred_check_branch
        %260 = sbr.rel (%p258) target = $region36
      $region35: #{tpu_custom_call.1} parent=5 // pred_region
        // Predicated region
        $region37: #{tpu_custom_call.1} parent=35 // pred_check
          %p261 = pneg %p38
        $region38: #{tpu_custom_call.1} parent=35 // pred_check_branch
          %263 = sbr.rel (%p261) target = $region40
        $region39: #{tpu_custom_call.1} parent=35 // pred_region
          %p264 = scmp.lt.s32.totalorder %s18, 1
          %s265 = scalar_select %p264, %s18, 1
          %s266 = smul.addr %s265, 3
          %s267 = smul.addr %s266, 4
          %s268 = scalar_lea.vmem %s0, %s267
        $region40: #{tpu_custom_call.1} parent=35 // pred_fallthru
          _
        // Predicated region
        $region41: #{tpu_custom_call.1} parent=35 // pred_check
          %p269 = pneg %p169
        $region42: #{tpu_custom_call.1} parent=35 // pred_check_branch
          %271 = sbr.rel (%p269) target = $region44
        $region43: #{tpu_custom_call.1} parent=35 // pred_region
          %p272 = scmp.lt.s32.totalorder %s18, 1
          %s273 = scalar_select %p272, %s18, 1
          %s274 = scalar_lea.vmem %s6, %s273
        $region44: #{tpu_custom_call.1} parent=35 // pred_fallthru
          _
      $region36: #{tpu_custom_call.1} parent=5 // pred_fallthru
        _
      %p275 = scmp.le.s32.totalorder 1, %s18
      %p276 = scmp.lt.s32.totalorder %s18, 3
      %p277 = pnand %p275, %p276
      %p278 = pneg %p277
      // Predicated region
      $region45: #{tpu_custom_call.1} parent=5 // pred_check
        _
      $region46: #{tpu_custom_call.1} parent=5 // pred_check_branch
        %280 = sbr.rel (%p277) target = $region48
      $region47: #{tpu_custom_call.1} parent=5 // pred_region
        %s281 = ssub.s32 %s18, 1
        %p282 = scmp.lt.s32.totalorder %s23, 1
        %s283 = scalar_select %p282, %s23, 1
        %s284 = smul.addr %s283, 3
        %s285 = smul.addr %s284, 4
        %s286 = scalar_lea.vmem %s0, %s285
        %p287 = pneg %p44
        %p288 = pneg %p41
        %p289 = pneg %p65
        %p290 = pneg %p62
        %p291 = pneg %p86
        %p292 = pneg %p83
        %p293 = pneg %p107
        %p294 = pneg %p104
        %p295 = pneg %p128
        %p296 = pneg %p125
        %p297 = pneg %p149
        %p298 = pneg %p146
        %p299 = scmp.lt.s32.totalorder %s23, 1
        %s300 = scalar_select %p299, %s23, 1
        %s301 = scalar_lea.vmem %s6, %s300
        %p302 = pneg %p175
        %p303 = pneg %p172
        %p304 = pneg %p201
        %p305 = pneg %p198
        %s306 = sand.u32 %s188, 1
        %s307 = scalar_lea.sflag [#allocation3], %s306
        %s308 = sand.u32 %s188, 1
        %s309 = scalar_lea.vmem [#allocation2], %s308
        %p310 = pneg %p227
        %p311 = pneg %p224
        %p312 = scmp.lt.s32.totalorder %s23, 1
        %s313 = scalar_select %p312, %s23, 1
        %s314 = scalar_lea.vmem %s8, %s313
        %p315 = scmp.lt.s32.totalorder %s23, 1
        %s316 = scalar_select %p315, %s23, 1
        %s317 = smul.addr %s316, 3
        %s318 = smul.addr %s317, 4
        %s319 = scalar_lea.vmem %s0, %s318
        %p320 = scmp.lt.s32.totalorder %s23, 1
        %s321 = scalar_select %p320, %s23, 1
        %s322 = scalar_lea.vmem %s6, %s321
        %p323 = scmp.lt.s32.totalorder %s23, 1
        %s324 = scalar_select %p323, %s23, 1
        %s325 = scalar_lea.vmem %s8, %s324
        %v327 = vld [vmem:[%s319] sm:$0xf]
        %v328 = vld [vmem:[%s319 + $0x4] sm:$0xf]
        %v329 = vld [vmem:[%s319 + $0x8] sm:$0x3]
        %v330 = vld [vmem:[%s1] sm:$0xf]
        %v331 = vld [vmem:[%s1 + $0x4] sm:$0xf]
        %v332 = vld [vmem:[%s1 + $0x8] sm:$0xf]
        %v333 = vld [vmem:[%s1 + $0xc] sm:$0xf]
        %v334 = vld [vmem:[%s1 + $0x10] sm:$0xf]
        %v335 = vld [vmem:[%s1 + $0x14] sm:$0xf]
        %v336 = vld [vmem:[%s1 + $0x18] sm:$0xf]
        %v337 = vld [vmem:[%s1 + $0x1c] sm:$0xf]
        %v341 = vunpack.c.l.b16 %v327
        %v342 = vunpack.c.l.b16 %v328
        %v343 = vunpack.c.l.b16 %v329
        %v344 = vpack.c.b16 %v342, %v341
        %v345 = vpack.c.b16 %v343, %v343
        %vm346 = vsmask.f32 7424
        %v348 = vshrl.u32 %v344, 16
        %v350 = vshll.u32 %v344, 16
        %v352 = vrot.slane %v350, 1
        %v353 = vor.u32 %v348, %v352
        %v355 = vshll.u32 %v345, 16
        %v357 = vrot.slane %v355, 1
        %v358 = vsel %vm346, %v353, %v357
        %v363 = vunpack.c.l.b16 %v334
        %v364 = vunpack.c.l.b16 %v335
        %v365 = vunpack.c.l.b16 %v336
        %v366 = vunpack.c.l.b16 %v337
        %v367 = vpack.c.b16 %v364, %v363
        %v368 = vpack.c.b16 %v366, %v365
        %vm371 = vcmask 261120
        %v373 = vsel %vm371, %v358, 0
        %375 = vmatpush.bf16.msra.mxu0 0
        %376 = vmatpush.bf16.msra.mxu0 0
        %377 = vmatpush.bf16.msra.mxu0 0
        %378 = vmatpush.bf16.msra.mxu0 0
        %379 = vmatpush.bf16.msra.mxu0 0
        %380 = vmatpush.bf16.msra.mxu0 0
        %381 = vmatpush.bf16.msra.mxu0 %v368
        %382 = vmatpush.bf16.msra.mxu0 %v367
        %383 = vmatmul.bf16.gmra.mxu0 %v373
        %v384 = vpop.f32.mrf.mxu0
        %v385 = vadd.f32 0.0, %v384
        %v386 = vpop.f32.mrf.mxu0
        %v387 = vadd.f32 0.0, %v386
        %388 = vdwg.mxu0
        %v393 = vunpack.c.l.b16 %v330
        %v394 = vunpack.c.l.b16 %v331
        %v395 = vunpack.c.l.b16 %v332
        %v396 = vunpack.c.l.b16 %v333
        %v397 = vpack.c.b16 %v394, %v393
        %v398 = vpack.c.b16 %v396, %v395
        %v401 = vsel %vm371, %v344, 0
        %403 = vmatpush.bf16.msra.mxu0 0
        %404 = vmatpush.bf16.msra.mxu0 0
        %405 = vmatpush.bf16.msra.mxu0 0
        %406 = vmatpush.bf16.msra.mxu0 0
        %407 = vmatpush.bf16.msra.mxu0 0
        %408 = vmatpush.bf16.msra.mxu0 0
        %409 = vmatpush.bf16.msra.mxu0 %v398
        %410 = vmatpush.bf16.msra.mxu0 %v397
        %411 = vmatmul.bf16.gmra.mxu0 %v401
        %v412 = vpop.f32.mrf.mxu0
        %v413 = vadd.f32 %v385, %v412
        %v414 = vpop.f32.mrf.mxu0
        %v415 = vadd.f32 %v387, %v414
        %416 = vdwg.mxu0
        %v417 = vld [vmem:[%s1 + $0x20] sm:$0xf]
        %v418 = vld [vmem:[%s1 + $0x24] sm:$0xf]
        %v419 = vld [vmem:[%s1 + $0x28] sm:$0xf]
        %v420 = vld [vmem:[%s1 + $0x2c] sm:$0xf]
        %vm421 = vcmask 1046528
        %v422 = vrot.slane %v344, 1
        %v423 = vrot.slane %v345, 1
        %v424 = vsel %vm421, %v422, %v423
        %v429 = vunpack.c.l.b16 %v417
        %v430 = vunpack.c.l.b16 %v418
        %v431 = vunpack.c.l.b16 %v419
        %v432 = vunpack.c.l.b16 %v420
        %v433 = vpack.c.b16 %v430, %v429
        %v434 = vpack.c.b16 %v432, %v431
        %v438 = vsel %vm371, %v424, 0
        %440 = vmatpush.bf16.msra.mxu0 0
        %441 = vmatpush.bf16.msra.mxu0 0
        %442 = vmatpush.bf16.msra.mxu0 0
        %443 = vmatpush.bf16.msra.mxu0 0
        %444 = vmatpush.bf16.msra.mxu0 0
        %445 = vmatpush.bf16.msra.mxu0 0
        %446 = vmatpush.bf16.msra.mxu0 %v434
        %447 = vmatpush.bf16.msra.mxu0 %v433
        %448 = vmatmul.bf16.gmra.mxu0 %v438
        %v449 = vpop.f32.mrf.mxu0
        %v450 = vadd.f32 0.0, %v449
        %v451 = vpop.f32.mrf.mxu0
        %v452 = vadd.f32 0.0, %v451
        %453 = vdwg.mxu0
        %v454 = vadd.f32 %v413, %v450
        %v455 = vadd.f32 %v415, %v452
        %v456 = vld [vmem:[%s1 + $0x30] sm:$0xf]
        %v457 = vld [vmem:[%s1 + $0x34] sm:$0xf]
        %v458 = vld [vmem:[%s1 + $0x38] sm:$0xf]
        %v459 = vld [vmem:[%s1 + $0x3c] sm:$0xf]
        %vm460 = vsmask.f32 6400
        %v461 = vrot.slane %v348, 1
        %v462 = vrot.slane %v350, 2
        %v463 = vor.u32 %v461, %v462
        %v464 = vshrl.u32 %v345, 16
        %v466 = vrot.slane %v464, 1
        %v467 = vrot.slane %v355, 2
        %v468 = vor.u32 %v466, %v467
        %v469 = vsel %vm460, %v463, %v468
        %v474 = vunpack.c.l.b16 %v456
        %v475 = vunpack.c.l.b16 %v457
        %v476 = vunpack.c.l.b16 %v458
        %v477 = vunpack.c.l.b16 %v459
        %v478 = vpack.c.b16 %v475, %v474
        %v479 = vpack.c.b16 %v477, %v476
        %v483 = vsel %vm371, %v469, 0
        %485 = vmatpush.bf16.msra.mxu0 0
        %486 = vmatpush.bf16.msra.mxu0 0
        %487 = vmatpush.bf16.msra.mxu0 0
        %488 = vmatpush.bf16.msra.mxu0 0
        %489 = vmatpush.bf16.msra.mxu0 0
        %490 = vmatpush.bf16.msra.mxu0 0
        %491 = vmatpush.bf16.msra.mxu0 %v479
        %492 = vmatpush.bf16.msra.mxu0 %v478
        %493 = vmatmul.bf16.gmra.mxu0 %v483
        %v494 = vpop.f32.mrf.mxu0
        %v495 = vadd.f32 0.0, %v494
        %v496 = vpop.f32.mrf.mxu0
        %v497 = vadd.f32 0.0, %v496
        %498 = vdwg.mxu0
        %v499 = vadd.f32 %v454, %v495
        %v500 = vadd.f32 %v455, %v497
        %v501 = vld [vmem:[%s1 + $0x40] sm:$0xf]
        %v502 = vld [vmem:[%s1 + $0x44] sm:$0xf]
        %v503 = vld [vmem:[%s1 + $0x48] sm:$0xf]
        %v504 = vld [vmem:[%s1 + $0x4c] sm:$0xf]
        %vm505 = vcmask 1045504
        %v506 = vrot.slane %v344, 2
        %v507 = vrot.slane %v345, 2
        %v508 = vsel %vm505, %v506, %v507
        %v513 = vunpack.c.l.b16 %v501
        %v514 = vunpack.c.l.b16 %v502
        %v515 = vunpack.c.l.b16 %v503
        %v516 = vunpack.c.l.b16 %v504
        %v517 = vpack.c.b16 %v514, %v513
        %v518 = vpack.c.b16 %v516, %v515
        %v522 = vsel %vm371, %v508, 0
        %524 = vmatpush.bf16.msra.mxu0 0
        %525 = vmatpush.bf16.msra.mxu0 0
        %526 = vmatpush.bf16.msra.mxu0 0
        %527 = vmatpush.bf16.msra.mxu0 0
        %528 = vmatpush.bf16.msra.mxu0 0
        %529 = vmatpush.bf16.msra.mxu0 0
        %530 = vmatpush.bf16.msra.mxu0 %v518
        %531 = vmatpush.bf16.msra.mxu0 %v517
        %532 = vmatmul.bf16.gmra.mxu0 %v522
        %v533 = vpop.f32.mrf.mxu0
        %v534 = vadd.f32 0.0, %v533
        %v535 = vpop.f32.mrf.mxu0
        %v536 = vadd.f32 0.0, %v535
        %537 = vdwg.mxu0
        %v538 = vadd.f32 %v499, %v534
        %v539 = vadd.f32 %v500, %v536
        %v540 = vld [vmem:[%s2] sm:$0x1]
        %v542 = vperm.slane %v540, 0
        %v544 = vadd.f32 %v538, %v542
        %v545 = vadd.f32 %v539, %v542
        %v546 = vtanh.pop %v544
        %v547 = vtanh.pop %v545
        %v548 = vld [vmem:[%s3] sm:$0xff]
        %v549 = vld [vmem:[%s3 + $0x8] sm:$0xff]
        %v550 = vadd.f32 %v546, %v548
        %v551 = vadd.f32 %v547, %v549
        %vm552 = vcmask 523264
        %v553 = vsel %vm552, %v550, -inf
        %v554 = vsel %vm552, %v551, -inf
        %v555 = vmax.f32 %v553, %v554
        %v556 = vrot.slane %v555, 4
        %v557 = vmax.f32 %v555, %v556
        %v558 = vrot.slane %v557, 2
        %v559 = vmax.f32 %v557, %v558
        %v560 = vrot.slane %v559, 1
        %v561 = vmax.f32 %v559, %v560
        %v562 = vpack.c.bf16 %v561, %v561
        %v563 = vld [vmem:[%s4] sm:$0xf]
        %v564 = vld [vmem:[%s4 + $0x4] sm:$0xf]
        %v565 = vld [vmem:[%s4 + $0x8] sm:$0xf]
        %v566 = vld [vmem:[%s4 + $0xc] sm:$0xf]
        %v567 = vld [vmem:[%s4 + $0x10] sm:$0xf]
        %v568 = vld [vmem:[%s4 + $0x14] sm:$0xf]
        %v569 = vld [vmem:[%s4 + $0x18] sm:$0xf]
        %v570 = vld [vmem:[%s4 + $0x1c] sm:$0xf]
        %v571 = vld [vmem:[%s5] sm:$0x1]
        %v580 = vunpack.c.l.b16 %v563
        %v581 = vunpack.c.l.b16 %v564
        %v582 = vunpack.c.l.b16 %v565
        %v583 = vunpack.c.l.b16 %v566
        %v584 = vunpack.c.l.b16 %v567
        %v585 = vunpack.c.l.b16 %v568
        %v586 = vunpack.c.l.b16 %v569
        %v587 = vunpack.c.l.b16 %v570
        %v588 = vpack.c.b16 %v581, %v580
        %v589 = vpack.c.b16 %v583, %v582
        %v590 = vpack.c.b16 %v585, %v584
        %v591 = vpack.c.b16 %v587, %v586
        %v597 = vsel %vm552, %v562, 0
        %599 = vmatpush.bf16.msra.mxu0 0
        %600 = vmatpush.bf16.msra.mxu0 0
        %601 = vmatpush.bf16.msra.mxu0 0
        %602 = vmatpush.bf16.msra.mxu0 0
        %603 = vmatpush.bf16.msra.mxu0 %v591
        %604 = vmatpush.bf16.msra.mxu0 %v590
        %605 = vmatpush.bf16.msra.mxu0 %v589
        %606 = vmatpush.bf16.msra.mxu0 %v588
        %607 = vmatmul.bf16.gmra.mxu0 %v597
        %v608 = vpop.f32.mrf.mxu0
        %v609 = vadd.f32 %v571, %v608
        %v610 = vpop.f32.mrf.mxu0
        %611 = vdwg.mxu0
        %v612 = vxor.u32 %v609, 2147483648
        %v613 = vmul.f32 %v612, 1.442695
        %v614 = vpow.pop %v613
        %v615 = vadd.f32 %v614, 1.0
        %v616 = vrcp.pop %v615
        %v617 = vmul.f32 %v615, %v616
        %v618 = vsub.f32 1.0, %v617
        %v619 = vmul.f32 %v616, %v618
        %v620 = vadd.f32 %v616, %v619
        %vm621 = vweird.f32 %v615
        %vm622 = vweird.f32 %v616
        %vm623 = vmor %vm621, %vm622
        %v624 = vsel %vm623, %v616, %v620
        %v625 = vand.u32 2147483647, %v615
        %vm626 = vcmp.eq.f32.partialorder %v625, 8.507059e+37
        %v627 = vand.u32 %v615, 2147483648
        %v628 = vor.u32 1.1754944e-38, %v627
        %v629 = vsel %vm626, %v628, %v624
        %v630 = vmul.f32 1.0, %v629
        %vm631 = vcmask 24576
        %632 = vst.msk [vmem:[%s309] sm:$0x1] %vm631, %v630
        %v633 = vld [vmem:[%s322] sm:$0x1]
        %v634 = vmax.f32 %v609, 0.0
        %v635 = vmul.f32 %v609, %v633
        %v636 = vsub.f32 %v634, %v635
        %v637 = vand.u32 2147483647, %v609
        %v638 = vsub.f32 0.0, %v637
        %v639 = vmul.f32 %v638, 1.442695
        %v640 = vpow.pop %v639
        %v641 = vadd.f32 %v640, 1.0
        %v642 = vlog2.pop %v641
        %v643 = vmul.f32 %v642, 0.6931472
        %v644 = vmul.f32 -0.5, %v640
        %v645 = vadd.f32 %v644, 1.0
        %v646 = vmul.f32 %v645, %v640
        %v647 = vand.u32 2147483647, %v640
        %vm648 = vcmp.lt.f32.partialorder %v647, 0.0004427343
        %v649 = vsel %vm648, %v646, %v643
        %v650 = vadd.f32 %v636, %v649
        %v651 = vsel %vm631, %v650, 0.0
        %652 = vadd.xlane.f32.xlu0 %v651
        %v653 = vpop.xlane.xlu0 %652
        %v654 = vadd.f32 %v653, 0.0
        %vm655 = vcmask 0
        %656 = vst.msk [vmem:[%s325] sm:$0x1] %vm655, %v654
        %s657 = sand.u32 %s188, 1
        %s658 = scalar_lea.sflag [#allocation3], %s657
        %s659 = sand.u32 %s188, 1
        %s660 = scalar_lea.vmem [#allocation2], %s659
        %p661 = scmp.lt.s32.totalorder %s23, 1
        %s662 = scalar_select %p661, %s23, 1
        %s663 = scalar_lea.vmem %s8, %s662
        // Predicated region
        $region49: #{tpu_custom_call.1} parent=47 // pred_check
          %p664 = pneg %p198
        $region50: #{tpu_custom_call.1} parent=47 // pred_check_branch
          %666 = sbr.rel (%p664) target = $region52
        $region51: #{tpu_custom_call.1} parent=47 // pred_region
          %668 = vsyncadd %s658, 0
          %s669 = scalar_lea.hbm %s7, %s23
          %s671 = sshll.u32 %s660, 4
          %s672 = int_to_ptr.vmem [resolvable:$true] %s671
          %s673 = sshll.u32 %s669, 4
          %s674 = int_to_ptr.hbm [resolvable:$true] %s673
          %676 = dma.vmem_to_hbm [thread:$0]  %s672, 16, %s674, %s658
        $region52: #{tpu_custom_call.1} parent=47 // pred_fallthru
          _
        // Predicated region
        $region53: #{tpu_custom_call.1} parent=47 // pred_check
          %p677 = pneg %p224
        $region54: #{tpu_custom_call.1} parent=47 // pred_check_branch
          %679 = sbr.rel (%p677) target = $region56
        $region55: #{tpu_custom_call.1} parent=47 // pred_region
          _
        $region56: #{tpu_custom_call.1} parent=47 // pred_fallthru
          _
      $region48: #{tpu_custom_call.1} parent=5 // pred_fallthru
        _
      %p680 = scmp.le.s32.totalorder 2, %s18
      // Predicated region
      $region57: #{tpu_custom_call.1} parent=5 // pred_check
        %p681 = pneg %p680
      $region58: #{tpu_custom_call.1} parent=5 // pred_check_branch
        %683 = sbr.rel (%p681) target = $region60
      $region59: #{tpu_custom_call.1} parent=5 // pred_region
        %s684 = ssub.s32 %s18, 2
        // Predicated region
        $region61: #{tpu_custom_call.1} parent=59 // pred_check
          %p685 = pneg %p204
        $region62: #{tpu_custom_call.1} parent=59 // pred_check_branch
          %687 = sbr.rel (%p685) target = $region64
        $region63: #{tpu_custom_call.1} parent=59 // pred_region
          %s688 = sand.u32 %s189, 1
          %s689 = scalar_lea.sflag [#allocation3], %s688
          %s690 = sand.u32 %s189, 1
          %s691 = scalar_lea.vmem [#allocation2], %s690
          %693 = dma.done %s689, 16
        $region64: #{tpu_custom_call.1} parent=59 // pred_fallthru
          _
        // Predicated region
        $region65: #{tpu_custom_call.1} parent=59 // pred_check
          %p694 = pneg %p230
        $region66: #{tpu_custom_call.1} parent=59 // pred_check_branch
          %696 = sbr.rel (%p694) target = $region68
        $region67: #{tpu_custom_call.1} parent=59 // pred_region
          %p697 = scmp.lt.s32.totalorder %s24, 1
          %s698 = scalar_select %p697, %s24, 1
          %s699 = scalar_lea.vmem %s8, %s698
        $region68: #{tpu_custom_call.1} parent=59 // pred_fallthru
          _
      $region60: #{tpu_custom_call.1} parent=5 // pred_fallthru
        _
    $region6: #{tpu_custom_call.1} parent=1 // loop_footer
      %s22 = sadd.s32 1, %s18
    $region7: #{tpu_custom_call.1} parent=1 // loop_footer_branch
      %17 = sbr.rel target = $region3
    $region8: #{tpu_custom_call.1} parent=1 // loop_exit
      _
    %700 = vsyncpa [#allocation3], 1
    %s701 = scalar_lea.sflag [#allocation3], 1
    %702 = vsyncpa %s701, 1

</llo_original>
